<compile_context>
chip_gen: v7x
topology: tpu7x:2x2x1
jax: 0.10.0
libtpu: 0.0.40
codegen_flags: <defaults>
</compile_context>

<pallas_src>
import jax
import jax.numpy as jnp
from jax.experimental import pallas as pl
from jax.experimental.pallas import tpu as pltpu


def _round_up(x, m):
    return ((x + m - 1) // m) * m


def fused_linear_kernel(x_ref, w_ref, b_ref, o_ref):
    # One MXU matmul for both the f and s heads (weights concatenated along
    # the output dim): bf16 operands, f32 accumulation, f32 bias broadcast.
    o_ref[...] = (
        jnp.dot(x_ref[...], w_ref[...], preferred_element_type=jnp.float32)
        + b_ref[...]
    )


# Below this much kernel I/O a single fused XLA dot beats pallas_call's fixed
# launch + ~0.35us/grid-step overhead.
_PALLAS_MIN_IO_BYTES = 256 << 10


def _fused_heads_pallas(x, w, b, *, tile_n):
    """x: (N, dim) bf16, w: (dim, C) bf16, b: (1, C) f32 -> (N, C) f32."""
    N, dim = x.shape
    C = w.shape[1]
    x_bytes = x.dtype.itemsize
    w_bytes = w.dtype.itemsize

    # Row tile: as large as possible (amortizes per-step pipeline overhead),
    # multiple of 16 for bf16 sublane packing.  If that would leave a single
    # grid step for a large N, split it so v7x megacore can use both TCs.
    TN = min(tile_n, _round_up(N, 16))
    if N > 32 and pl.cdiv(N, TN) < 2:
        TN = max(16, _round_up(pl.cdiv(N, 2), 16))
    grid = (pl.cdiv(N, TN),)  # ragged last block handled by Pallas (no pad copy)

    # Exact double-buffered VMEM footprint (+20% headroom).  Only raise the
    # limit above the compiler's scoped default when we actually need to; cap
    # at 48 MiB to leave headroom inside v7x's 64 MiB per-TC VMEM.
    footprint = 2 * (TN * dim * x_bytes + TN * C * 4) + dim * C * w_bytes + C * 4
    footprint = int(footprint * 1.2)
    vmem_limit = min(footprint, 48 << 20) if footprint > (32 << 20) else None

    cost = pl.CostEstimate(
        flops=2 * N * dim * C,
        transcendentals=0,
        bytes_accessed=N * dim * x_bytes + N * C * 4 + dim * C * w_bytes + C * 4,
    )

    return pl.pallas_call(
        fused_linear_kernel,
        out_shape=jax.ShapeDtypeStruct((N, C), jnp.float32),
        grid_spec=pltpu.PrefetchScalarGridSpec(
            num_scalar_prefetch=0,
            grid=grid,
            in_specs=[
                pl.BlockSpec((TN, dim), lambda i: (i, 0)),  # x row tile
                pl.BlockSpec((dim, C), lambda i: (0, 0)),   # fused weight (resident)
                pl.BlockSpec((1, C), lambda i: (0, 0)),     # fused bias (resident)
            ],
            out_specs=pl.BlockSpec((TN, C), lambda i: (i, 0)),
        ),
        compiler_params=pltpu.CompilerParams(
            dimension_semantics=("parallel",),  # row tiles are independent
            vmem_limit_bytes=vmem_limit,
        ),
        cost_estimate=cost,
    )(x, w, b)


def tfbase_forward(features, params, *, tile_n=8192, use_pallas=None,
                   broadcast_pairwise=True):
    """Forward pass of TFBase(no_adap=True, pairwise_type=1).

    features: (seq, batch, dim) float32
    returns (f, s, fs, ff, ss, fs_t, sf_t) matching the PyTorch module.
    """
    seq, batch, dim = features.shape
    N = seq * batch
    Fc, Sc = params["f_classes"], params["s_classes"]
    C = Fc + Sc

    # bf16 inputs halve the dominant HBM read; accumulation stays f32.
    x = features.reshape(N, dim).astype(jnp.bfloat16)
    w = params["w_fused_bf16"]
    b = params["b_fused"]

    if use_pallas is None:
        io_bytes = N * (dim * x.dtype.itemsize + C * 4)
        use_pallas = io_bytes >= _PALLAS_MIN_IO_BYTES

    if use_pallas:
        flat = _fused_heads_pallas(x, w, b, tile_n=tile_n)
    else:
        # Tiny problem: a single fused XLA dot wins over pallas_call overhead.
        flat = jnp.dot(x, w, preferred_element_type=jnp.float32) + b

    f = flat[:, :Fc].reshape(seq, -1, Fc)
    s = flat[:, Fc:].reshape(seq, -1, Sc)

    # Pairwise heads (no_adap=True): ones(N,1) @ W.T == W broadcast over rows,
    # with the masks already folded into the weights.  Feature-independent, so
    # no kernel; broadcast is left to XLA (fuses with consumers under jit).
    def pairwise(w_row, a, b_):
        if broadcast_pairwise:
            return jnp.broadcast_to(w_row, (N, a * b_)).reshape(seq, -1, a, b_)
        # TODO(synk): consumers that accept the per-row constant can take the
        # (a, b_) weight directly and skip the N-way HBM replication entirely.
        return w_row.reshape(a, b_)

    fs   = pairwise(params["wfs_masked"],  Fc, Sc)
    ff   = pairwise(params["wff"],         Fc, Fc)
    ss   = pairwise(params["wss"],         Sc, Sc)
    fs_t = pairwise(params["wfst_masked"], Fc, Sc)  # PyTorch uses the untransposed mask here
    sf_t = pairwise(params["wsft_masked"], Sc, Fc)  # ... and the transposed mask here

    return f, s, fs, ff, ss, fs_t, sf_t


def init_params(key, dim, f_classes, s_classes):
    ks = jax.random.split(key, 10)
    Fc, Sc = f_classes, s_classes
    scale = 1.0 / jnp.sqrt(dim)

    # Main linear heads (stored pre-transposed: (in_dim, out_dim)).
    wf = jax.random.uniform(ks[0], (dim, Fc), jnp.float32, -scale, scale)
    bf = jax.random.uniform(ks[1], (1, Fc),  jnp.float32, -scale, scale)
    ws = jax.random.uniform(ks[2], (dim, Sc), jnp.float32, -scale, scale)
    bs = jax.random.uniform(ks[3], (1, Sc),  jnp.float32, -scale, scale)

    # Pairwise heads: Linear(1, A*B, bias=False) -> weight vector (1, A*B).
    wfs  = jax.random.uniform(ks[4], (1, Fc * Sc), jnp.float32, -1.0, 1.0)
    wff  = jax.random.uniform(ks[5], (1, Fc * Fc), jnp.float32, -1.0, 1.0)
    wss  = jax.random.uniform(ks[6], (1, Sc * Sc), jnp.float32, -1.0, 1.0)
    wfst = jax.random.uniform(ks[7], (1, Fc * Sc), jnp.float32, -1.0, 1.0)
    wsft = jax.random.uniform(ks[8], (1, Sc * Fc), jnp.float32, -1.0, 1.0)

    # fs_mask: flat (Fc*Sc,), binary; mask_t = reshape(Fc, Sc).T flattened.
    mfs_flat = (jax.random.uniform(ks[9], (Fc * Sc,)) > 0.3).astype(jnp.float32)
    msft_flat = mfs_flat.reshape(Fc, Sc).T.reshape(-1)
    mfs = mfs_flat.reshape(1, Fc * Sc)
    msft = msft_flat.reshape(1, Sc * Fc)

    w_fused = jnp.concatenate([wf, ws], axis=1)            # (dim, Fc+Sc)
    return {
        "f_classes": Fc, "s_classes": Sc,
        # raw params (kept for reference checks)
        "wf": wf, "bf": bf, "ws": ws, "bs": bs,
        "wfs": wfs, "wff": wff, "wss": wss, "wfst": wfst, "wsft": wsft,
        "mfs": mfs, "msft": msft,
        # fused / pre-masked params actually used by the forward pass
        "w_fused": w_fused,
        "w_fused_bf16": w_fused.astype(jnp.bfloat16),
        "b_fused": jnp.concatenate([bf, bs], axis=1),       # (1, Fc+Sc)
        "wfs_masked": wfs * mfs,
        "wfst_masked": wfst * mfs,
        "wsft_masked": wsft * msft,
    }


def _reference_heads(features, params):
    """Plain-JAX reference of the PyTorch f/s heads with bf16-cast operands."""
    seq, batch, dim = features.shape
    N = seq * batch
    Fc, Sc = params["f_classes"], params["s_classes"]
    xb = features.reshape(N, dim).astype(jnp.bfloat16).astype(jnp.float32)
    wb = params["w_fused"].astype(jnp.bfloat16).astype(jnp.float32)
    flat = xb @ wb + params["b_fused"]
    return flat[:, :Fc].reshape(seq, -1, Fc), flat[:, Fc:].reshape(seq, -1, Sc)


if __name__ == "__main__":
    seq, batch, dim = 8, 2, 32
    f_classes, s_classes = 4, 6

    key = jax.random.PRNGKey(0)
    k_feat, k_par, k_feat2 = jax.random.split(key, 3)
    features = jax.random.normal(k_feat, (seq, batch, dim), jnp.float32)
    params = init_params(k_par, dim, f_classes, s_classes)

    # --- Pallas path (forced on, so the kernel is exercised at demo size) ---
    outs = tfbase_forward(features, params, use_pallas=True)
    outs = jax.block_until_ready(outs)
    f, s, fs, ff, ss, fs_t, sf_t = outs

    # Reference of the original PyTorch forward (bf16-cast operands for the
    # f/s heads -> tight tolerance; f32 reference -> loose tolerance).
    N = seq * batch
    x32 = features.reshape(N, dim)
    ref_f_bf16, ref_s_bf16 = _reference_heads(features, params)
    ref_f_f32 = (x32 @ params["wf"] + params["bf"]).reshape(seq, -1, f_classes)
    ref_s_f32 = (x32 @ params["ws"] + params["bs"]).reshape(seq, -1, s_classes)

    def ref_bcast(w, m, a, b):
        row = w * m if m is not None else w
        return jnp.broadcast_to(row, (N, a * b)).reshape(seq, -1, a, b)

    ref_fs  = ref_bcast(params["wfs"],  params["mfs"],  f_classes, s_classes)
    ref_ff  = ref_bcast(params["wff"],  None,           f_classes, f_classes)
    ref_ss  = ref_bcast(params["wss"],  None,           s_classes, s_classes)
    ref_fst = ref_bcast(params["wfst"], params["mfs"],  f_classes, s_classes)
    ref_sft = ref_bcast(params["wsft"], params["msft"], s_classes, f_classes)

    assert f.shape == (seq, batch, f_classes)
    assert s.shape == (seq, batch, s_classes)
    assert fs.shape == (seq, batch, f_classes, s_classes)
    assert ff.shape == (seq, batch, f_classes, f_classes)
    assert ss.shape == (seq, batch, s_classes, s_classes)
    assert fs_t.shape == (seq, batch, f_classes, s_classes)
    assert sf_t.shape == (seq, batch, s_classes, f_classes)
    assert jnp.allclose(f, ref_f_bf16, atol=1e-4, rtol=1e-4)
    assert jnp.allclose(s, ref_s_bf16, atol=1e-4, rtol=1e-4)
    assert jnp.allclose(f, ref_f_f32, atol=5e-2)
    assert jnp.allclose(s, ref_s_f32, atol=5e-2)
    assert jnp.allclose(fs, ref_fs, atol=1e-6)
    assert jnp.allclose(ff, ref_ff, atol=1e-6)
    assert jnp.allclose(ss, ref_ss, atol=1e-6)
    assert jnp.allclose(fs_t, ref_fst, atol=1e-6)
    assert jnp.allclose(sf_t, ref_sft, atol=1e-6)

    # --- Ragged-N case: exercises cdiv grid + partial last block (no pad) ---
    seq2, batch2 = 37, 3
    features2 = jax.random.normal(k_feat2, (seq2, batch2, dim), jnp.float32)
    f2, s2, *_ = jax.block_until_ready(
        tfbase_forward(features2, params, use_pallas=True))
    ref_f2, ref_s2 = _reference_heads(features2, params)
    assert f2.shape == (seq2, batch2, f_classes)
    assert s2.shape == (seq2, batch2, s_classes)
    assert jnp.allclose(f2, ref_f2, atol=1e-4, rtol=1e-4)
    assert jnp.allclose(s2, ref_s2, atol=1e-4, rtol=1e-4)

    # --- Auto path (size gate): tiny demo shape falls back to a plain dot ---
    f3, s3, *_ = jax.block_until_ready(tfbase_forward(features, params))
    assert jnp.allclose(f3, ref_f_bf16, atol=1e-4, rtol=1e-4)
    assert jnp.allclose(s3, ref_s_bf16, atol=1e-4, rtol=1e-4)

    print("KERNEL_OK")
</pallas_src>

<mosaic_0001>
module attributes {stable_mosaic.version = 11 : i64} {
  func.func @fused_linear_kernel(%arg0: i32, %arg1: memref<16x32xbf16, #tpu.memory_space<vmem>>, %arg2: memref<32x10xbf16, #tpu.memory_space<vmem>>, %arg3: memref<1x10xf32, #tpu.memory_space<vmem>>, %arg4: memref<16x10xf32, #tpu.memory_space<vmem>>) attributes {dimension_semantics = [#tpu.dimension_semantics<parallel>], iteration_bounds = array<i64: 1>, scalar_prefetch = 0 : i64, scratch_operands = 0 : i64, tpu.core_type = #tpu.core_type<tc>, window_params = [{transform_indices = @transform_0, window_bounds = array<i64: 16, 32>}, {pipeline_mode = #tpu.pipeline_mode<synchronous>, transform_indices = @transform_1, window_bounds = array<i64: 32, 10>}, {pipeline_mode = #tpu.pipeline_mode<synchronous>, transform_indices = @transform_2, window_bounds = array<i64: 1, 10>}, {transform_indices = @transform_3, window_bounds = array<i64: 16, 10>}]} {
    %c0 = arith.constant 0 : index
    %c0_0 = arith.constant 0 : index
    %0 = vector.load %arg1[%c0, %c0_0] : memref<16x32xbf16, #tpu.memory_space<vmem>>, vector<16x32xbf16>
    %c0_1 = arith.constant 0 : index
    %c0_2 = arith.constant 0 : index
    %1 = vector.load %arg2[%c0_1, %c0_2] : memref<32x10xbf16, #tpu.memory_space<vmem>>, vector<32x10xbf16>
    %cst = arith.constant dense<0.000000e+00> : vector<16x10xf32>
    %2 = tpu.matmul %0, %1, %cst {dimension_numbers = #tpu.dot_dimension_numbers<[1], [0], [0], [1], [0, 0, 1, 1], [], []>} : vector<16x32xbf16>, vector<32x10xbf16>, vector<16x10xf32> -> vector<16x10xf32>
    %c0_3 = arith.constant 0 : index
    %c0_4 = arith.constant 0 : index
    %3 = vector.load %arg3[%c0_3, %c0_4] : memref<1x10xf32, #tpu.memory_space<vmem>>, vector<1x10xf32>
    %4 = vector.broadcast %3 : vector<1x10xf32> to vector<16x10xf32>
    %5 = arith.addf %2, %4 : vector<16x10xf32>
    %c0_5 = arith.constant 0 : index
    %c0_6 = arith.constant 0 : index
    %6 = vector.load %arg4[%c0_5, %c0_6] : memref<16x10xf32, #tpu.memory_space<vmem>>, vector<16x10xf32>
    tpu.vector_store %arg4[%c0_5, %c0_6], %5 {strides = array<i32>} : memref<16x10xf32, #tpu.memory_space<vmem>>, vector<16x10xf32>,
    return
  }
  func.func @transform_0(%arg0: i32) -> (i32, i32) {
    %c0_i32 = arith.constant 0 : i32
    %c0_i32_0 = arith.constant 0 : i32
    return %arg0, %c0_i32 : i32, i32
  }
  func.func @transform_1(%arg0: i32) -> (i32, i32) {
    %c0_i32 = arith.constant 0 : i32
    %c0_i32_0 = arith.constant 0 : i32
    %c0_i32_1 = arith.constant 0 : i32
    return %c0_i32, %c0_i32_0 : i32, i32
  }
  func.func @transform_2(%arg0: i32) -> (i32, i32) {
    %c0_i32 = arith.constant 0 : i32
    %c0_i32_0 = arith.constant 0 : i32
    %c0_i32_1 = arith.constant 0 : i32
    return %c0_i32, %c0_i32_0 : i32, i32
  }
  func.func @transform_3(%arg0: i32) -> (i32, i32) {
    %c0_i32 = arith.constant 0 : i32
    %c0_i32_0 = arith.constant 0 : i32
    return %arg0, %c0_i32 : i32, i32
  }
}

</mosaic_0001>

<llo_original>
// kernel: tpu_custom_call.1
$region0: #{tpu_custom_call.1}
  #allocation0 [shape = 'u32[]', space=smem, size = 0x4, offset = 0x4, fixed_abs, tag = 'smem constant byte address 0x4 - core index']
  #allocation1 [shape = 'u32[144,128]{1,0:T(1,128)}', space=vmem, size = 0x12000, scoped, tag = 'internal scratch']
  %s0 = inlined_call_operand.vmem [shape: bf16[16,32], index: 0, kind: input, shape index: {}]
  %s1 = inlined_call_operand.vmem [shape: bf16[32,10], index: 1, kind: input, shape index: {}]
  %s2 = inlined_call_operand.vmem [shape: f32[1,10], index: 2, kind: input, shape index: {}]
  %s3 = inlined_call_operand.hbm [shape: f32[16,10], index: 3, kind: output, shape index: {}]
  %s4 = sld [smem:[#allocation0]]
  $region22: #{tpu_custom_call.1} parent=0
    _
  %s6 = ssub.s32 1, %s4
  %s7 = scalar_select 0, %s6, %s4
  $region1: #{tpu_custom_call.1} parent=0
    #allocation2 [shape = 'u8[8192]{0}', space=vmem, size = 0x2000, scoped, tag = 'output window, operand 0, single buffered']
    #allocation3 [shape = 's32[1]{0}', space=sflag, size = 0x4, scoped, tag = 'scoped memory for tpu_custom_call.1']
    %8 = vsyncpa [#allocation3], 0
    // Predicated region
    $region2: #{tpu_custom_call.1} parent=1 // pred_check
      _
    $region3: #{tpu_custom_call.1} parent=1 // pred_check_branch
      %10 = sbr.rel (0) target = $region5
    $region4: #{tpu_custom_call.1} parent=1 // pred_region
      _
    $region5: #{tpu_custom_call.1} parent=1 // pred_fallthru
      _
    // Predicated region
    $region6: #{tpu_custom_call.1} parent=1 // pred_check
      _
    $region7: #{tpu_custom_call.1} parent=1 // pred_check_branch
      %12 = sbr.rel (0) target = $region9
    $region8: #{tpu_custom_call.1} parent=1 // pred_region
      _
    $region9: #{tpu_custom_call.1} parent=1 // pred_fallthru
      _
    // Predicated region
    $region10: #{tpu_custom_call.1} parent=1 // pred_check
      _
    $region11: #{tpu_custom_call.1} parent=1 // pred_check_branch
      %14 = sbr.rel (0) target = $region13
    $region12: #{tpu_custom_call.1} parent=1 // pred_region
      _
    $region13: #{tpu_custom_call.1} parent=1 // pred_fallthru
      _
    %v16 = vld [vmem:[%s0] sm:$0xf]
    %v17 = vld [vmem:[%s0 + $0x4] sm:$0xf]
    %v18 = vld [vmem:[%s1] sm:$0xf]
    %v19 = vld [vmem:[%s1 + $0x4] sm:$0xf]
    %v20 = vld [vmem:[%s1 + $0x8] sm:$0xf]
    %v21 = vld [vmem:[%s1 + $0xc] sm:$0xf]
    %v22 = vld [vmem:[%s2] sm:$0x1]
    %v24 = vlaneseq
    %v25 = vshrl.u32 %v24, 7
    %v26 = vsub.s32 0, %v25
    %v27 = vrot.slane %v22, %v26
    %v31 = vunpack.c.l.b16 %v16
    %v32 = vunpack.c.l.b16 %v17
    %v33 = vpack.c.b16 %v32, %v31
    %v38 = vunpack.c.l.b16 %v18
    %v39 = vunpack.c.l.b16 %v19
    %v40 = vunpack.c.l.b16 %v20
    %v41 = vunpack.c.l.b16 %v21
    %v42 = vpack.c.b16 %v39, %v38
    %v43 = vpack.c.b16 %v41, %v40
    %vm46 = vcmask 261120
    %v48 = vsel %vm46, %v33, 0
    %50 = vmatprep.subr.bf16.mxu0 0
    %51 = vmatpush1.bf16.msra.mxu0 %v42
    %52 = vmatprep.subr.bf16.mxu0 0
    %53 = vmatpush1.bf16.msra.mxu0 %v43
    %54 = vmatprep.subr.bf16.mxu0 0
    %55 = vmatpush1.bf16.msra.mxu0 0
    %56 = vmatprep.subr.bf16.mxu0 0
    %57 = vmatpush1.bf16.msra.mxu0 0
    %58 = vmatprep.subr.bf16.mxu0 0
    %59 = vmatpush1.bf16.msra.mxu0 0
    %60 = vmatprep.subr.bf16.mxu0 0
    %61 = vmatpush1.bf16.msra.mxu0 0
    %62 = vmatprep.subr.bf16.mxu0 0
    %63 = vmatpush1.bf16.msra.mxu0 0
    %64 = vmatprep.subr.bf16.mxu0 0
    %65 = vmatpush1.bf16.msra.mxu0 0
    %66 = vmatprep.subr.bf16.mxu0 0
    %67 = vmatpush1.bf16.msra.mxu0 0
    %68 = vmatprep.subr.bf16.mxu0 0
    %69 = vmatpush1.bf16.msra.mxu0 0
    %70 = vmatprep.subr.bf16.mxu0 0
    %71 = vmatpush1.bf16.msra.mxu0 0
    %72 = vmatprep.subr.bf16.mxu0 0
    %73 = vmatpush1.bf16.msra.mxu0 0
    %74 = vmatprep.subr.bf16.mxu0 0
    %75 = vmatpush1.bf16.msra.mxu0 0
    %76 = vmatprep.subr.bf16.mxu0 0
    %77 = vmatpush1.bf16.msra.mxu0 0
    %78 = vmatprep.subr.bf16.mxu0 0
    %79 = vmatpush1.bf16.msra.mxu0 0
    %80 = vmatprep.subr.bf16.mxu0 0
    %81 = vmatpush1.bf16.msra.mxu0 0
    %82 = vmatprep.mubr.bf16.mxu0 0
    %83 = vmatmul.mubr.bf16.gmra.mrb[0].mxu0 %v48
    %v84 = vpop.f32.mrb[0].mxu0
    %v85 = vadd.f32 %v27, %v84
    %v86 = vpop.f32.mrb[0].mxu0
    %v87 = vpop.f32.mrb[0].mxu0
    %v88 = vadd.f32 %v27, %v87
    %v89 = vpop.f32.mrb[0].mxu0
    %90 = vdwg.mxu0
    %vm91 = vcmask 80896
    %92 = vst.msk [vmem:[#allocation2] sm:$0xff] %vm91, %v85
    %93 = vst.msk [vmem:[#allocation2 + $0x8] sm:$0xff] %vm91, %v88
    // Predicated region
    $region14: #{tpu_custom_call.1} parent=1 // pred_check
      _
    $region15: #{tpu_custom_call.1} parent=1 // pred_check_branch
      %95 = sbr.rel (0) target = $region17
    $region16: #{tpu_custom_call.1} parent=1 // pred_region
      %s97 = ssub.s32 256, 256
      %98 = vsyncadd [#allocation3], %s97
      %s99 = sshll.u32 [#allocation2], 4
      %s100 = int_to_ptr.vmem [resolvable:$true] %s99
      %105 = dma.vmem_to_hbm [thread:$0]  %s100, 256, %s3, [#allocation3], 128, 128, 8
    $region17: #{tpu_custom_call.1} parent=1 // pred_fallthru
      _
    // Predicated region
    $region18: #{tpu_custom_call.1} parent=1 // pred_check
      _
    $region19: #{tpu_custom_call.1} parent=1 // pred_check_branch
      %107 = sbr.rel (0) target = $region21
    $region20: #{tpu_custom_call.1} parent=1 // pred_region
      %108 = dma.done [#allocation3], 256
    $region21: #{tpu_custom_call.1} parent=1 // pred_fallthru
      _
    %109 = vsyncpa [#allocation3], 1

</llo_original>
